<compile_context>
chip_gen: v7x
topology: tpu7x:2x2x1
jax: 0.10.0
libtpu: 0.0.40
codegen_flags: <defaults>
</compile_context>

<pallas_src>
import functools

import jax
import jax.numpy as jnp
from jax import lax
from jax.experimental import pallas as pl
from jax.experimental.pallas import tpu as pltpu


def _round_up(x, m):
    return (x + m - 1) // m * m


def _vmem_limit_bytes():
    """Per-generation VMEM budget: ~half of physical (64 MiB on v5e/v6e, 32 MiB on v7x)."""
    cap = 64 * 1024 * 1024
    try:
        info = pltpu.get_tpu_info()
        cap = int(getattr(info, "vmem_capacity_bytes", cap) or cap)
    except Exception:
        pass
    return max(32 * 1024 * 1024, min(cap // 2, 96 * 1024 * 1024))


# ---------------------------------------------------------------------------
# Tiled matmul + bias: (M, Kp) @ (Kp, Np) + bias(1, Np), f32 accumulation.
# Kp / Np are already 128-aligned (prepacked weights); only M may need padding.
# ---------------------------------------------------------------------------
def _mm_bias_single_k_kernel(a_ref, b_ref, bias_ref, o_ref):
    # tk == K: no accumulator needed at all (review item 1 + "tk=K single step").
    o_ref[...] = (jnp.dot(a_ref[...], b_ref[...],
                          preferred_element_type=jnp.float32)
                  + bias_ref[...]).astype(o_ref.dtype)


def _mm_bias_multi_k_f32_kernel(a_ref, b_ref, bias_ref, o_ref):
    # f32 output: accumulate directly into o_ref (no VMEM scratch).
    k = pl.program_id(2)

    @pl.when(k == 0)
    def _():
        o_ref[...] = jnp.zeros_like(o_ref)

    o_ref[...] += jnp.dot(a_ref[...], b_ref[...],
                          preferred_element_type=jnp.float32)

    @pl.when(k == pl.num_programs(2) - 1)
    def _():
        o_ref[...] += bias_ref[...]


def _mm_bias_multi_k_acc_kernel(a_ref, b_ref, bias_ref, o_ref, acc_ref):
    # bf16 output with split K: keep an f32 accumulator (rare fallback path).
    k = pl.program_id(2)

    @pl.when(k == 0)
    def _():
        acc_ref[...] = jnp.zeros_like(acc_ref)

    acc_ref[...] += jnp.dot(a_ref[...], b_ref[...],
                            preferred_element_type=jnp.float32)

    @pl.when(k == pl.num_programs(2) - 1)
    def _():
        o_ref[...] = (acc_ref[...] + bias_ref[...]).astype(o_ref.dtype)


_MM_TILE_PREFS = (1024, 512, 256, 128)


def _pick_matmul_tiles(M, Kp, Np, in_elt, out_elt, budget):
    """Choose (tm, tn, tk) that fit the VMEM budget; prefer tk == Kp (single K step)."""
    m_cap = max(8, _round_up(M, 8))
    tm_cands = ([t for t in _MM_TILE_PREFS if t <= m_cap and M % t == 0]
                or [t for t in _MM_TILE_PREFS if t <= m_cap]
                or [m_cap])
    tn_cands = [t for t in _MM_TILE_PREFS if Np % t == 0] or [Np]
    tk_cands = [Kp] + [t for t in (2048, 1024, 512, 256, 128)
                       if t < Kp and Kp % t == 0]
    for tm in tm_cands:
        for tn in tn_cands:
            for tk in tk_cands:
                need = (2 * (tm * tk + tk * tn) * in_elt      # double-buffered inputs
                        + 2 * tm * tn * out_elt                # output tiles
                        + 2 * tn * 4)                          # bias
                if tk < Kp and out_elt < 4:
                    need += tm * tn * 4                        # acc scratch (fallback only)
                if need <= budget:
                    return tm, tn, tk
    return tm_cands[-1], tn_cands[-1], tk_cands[-1]


def _matmul_bias(a, b, bias, *, out_dtype, vmem_limit):
    """a: (M, Kp) compute dtype.  b: (Kp, Np) compute dtype.  bias: (1, Np) f32.

    Returns the FULL (M, Np) result (caller slices N) to avoid extra copies.
    """
    M, Kp = a.shape
    Kp2, Np = b.shape
    assert Kp == Kp2 and Kp % 128 == 0 and Np % 128 == 0

    in_elt = jnp.dtype(a.dtype).itemsize
    out_elt = jnp.dtype(out_dtype).itemsize
    tm, tn, tk = _pick_matmul_tiles(M, Kp, Np, in_elt, out_elt,
                                    int(vmem_limit * 0.8))
    Mp = _round_up(M, tm)
    a_p = jnp.pad(a, ((0, Mp - M), (0, 0))) if Mp != M else a

    nk = Kp // tk
    if nk == 1:
        kernel, scratch = _mm_bias_single_k_kernel, []
    elif out_dtype == jnp.float32:
        kernel, scratch = _mm_bias_multi_k_f32_kernel, []
    else:
        kernel, scratch = _mm_bias_multi_k_acc_kernel, [pltpu.VMEM((tm, tn), jnp.float32)]

    cost = pl.CostEstimate(
        flops=2 * Mp * Np * Kp,
        transcendentals=0,
        bytes_accessed=Mp * Kp * in_elt + Kp * Np * in_elt + Mp * Np * out_elt + Np * 4,
    )

    out = pl.pallas_call(
        kernel,
        out_shape=jax.ShapeDtypeStruct((Mp, Np), out_dtype),
        grid=(Mp // tm, Np // tn, nk),
        in_specs=[
            pl.BlockSpec((tm, tk), lambda i, j, k: (i, k)),
            pl.BlockSpec((tk, tn), lambda i, j, k: (k, j)),
            pl.BlockSpec((1, tn), lambda i, j, k: (0, j)),
        ],
        out_specs=pl.BlockSpec((tm, tn), lambda i, j, k: (i, j)),
        scratch_shapes=scratch,
        compiler_params=pltpu.CompilerParams(
            dimension_semantics=("parallel", "parallel", "arbitrary"),
            vmem_limit_bytes=vmem_limit,
        ),
        cost_estimate=cost,
    )(a_p, b, bias)
    return out[:M] if Mp != M else out


# ---------------------------------------------------------------------------
# Serial LSTM recurrence.  gates_x already contains x@W_ih^T + (b_ih + b_hh),
# laid out with each gate in its own 128-aligned Hp slot.
# ---------------------------------------------------------------------------
def _lstm_recurrence_kernel(gx_ref, whh_ref, h_out_ref, h_scr, c_scr, *,
                            ct, hp, unroll):
    @pl.when(pl.program_id(1) == 0)          # first time-chunk of this batch chunk
    def _():
        h_scr[...] = jnp.zeros_like(h_scr)
        c_scr[...] = jnp.zeros_like(c_scr)

    whh = whh_ref[...]                       # (Hp, 4*Hp), resident once in VMEM

    def step(t, carry):
        h, c = carry
        gates = (gx_ref[t].astype(jnp.float32)
                 + jnp.dot(h.astype(whh.dtype), whh,
                           preferred_element_type=jnp.float32))
        # PyTorch gate order [i, f, g, o]; each gate owns a lane-aligned Hp slot.
        i_g = jax.nn.sigmoid(gates[:, 0 * hp:1 * hp])
        f_g = jax.nn.sigmoid(gates[:, 1 * hp:2 * hp])
        g_g = jnp.tanh(gates[:, 2 * hp:3 * hp])
        o_g = jax.nn.sigmoid(gates[:, 3 * hp:4 * hp])
        c_new = f_g * c + i_g * g_g
        h_new = o_g * jnp.tanh(c_new)
        h_out_ref[t] = h_new.astype(h_out_ref.dtype)
        return (h_new, c_new)

    h_fin, c_fin = lax.fori_loop(0, ct, step, (h_scr[...], c_scr[...]),
                                 unroll=unroll)
    h_scr[...] = h_fin
    c_scr[...] = c_fin


def _lstm_recurrence(gates_x, whh_t, *, hp, ct, batch_chunks, vmem_limit):
    """gates_x: (T_pad, B_pad, 4*Hp).  whh_t: (Hp, 4*Hp).  Returns (T_pad, B_pad, Hp)."""
    T_pad, B_pad, G4 = gates_x.shape
    assert G4 == 4 * hp and T_pad % ct == 0 and B_pad % batch_chunks == 0
    Bc = B_pad // batch_chunks
    assert Bc % 8 == 0

    w_elt = jnp.dtype(whh_t.dtype).itemsize
    g_elt = jnp.dtype(gates_x.dtype).itemsize
    # Resident weight + double-buffered gates/h chunks + carries.
    need = (hp * G4 * w_elt
            + 2 * ct * Bc * G4 * g_elt
            + 2 * ct * Bc * hp * g_elt
            + 2 * Bc * hp * 4)
    limit = max(vmem_limit, need + (8 << 20))
    # TODO(synk): if `need` exceeds physical VMEM (v7x, H >= 2048), block W_hh^T along
    # the 4H axis instead of keeping it fully resident.

    cost = pl.CostEstimate(
        flops=2 * T_pad * B_pad * hp * G4 + 12 * T_pad * B_pad * hp,
        transcendentals=5 * T_pad * B_pad * hp,
        bytes_accessed=T_pad * B_pad * (G4 + hp) * g_elt + hp * G4 * w_elt,
    )

    unroll = max(1, min(4, ct))
    return pl.pallas_call(
        functools.partial(_lstm_recurrence_kernel, ct=ct, hp=hp, unroll=unroll),
        out_shape=jax.ShapeDtypeStruct((T_pad, B_pad, hp), gates_x.dtype),
        grid=(batch_chunks, T_pad // ct),
        in_specs=[
            pl.BlockSpec((ct, Bc, G4), lambda b, t: (t, b, 0)),
            # Loop-invariant recurrent weight: single copy resident in VMEM for the
            # whole grid (no per-step DMA, no double buffering).
            pl.BlockSpec(memory_space=pltpu.MemorySpace.VMEM),
        ],
        out_specs=pl.BlockSpec((ct, Bc, hp), lambda b, t: (t, b, 0)),
        scratch_shapes=[
            pltpu.VMEM((Bc, hp), jnp.float32),    # h carry (f32)
            pltpu.VMEM((Bc, hp), jnp.float32),    # c carry (f32)
        ],
        compiler_params=pltpu.CompilerParams(
            # batch axis is independent ("parallel", feeds v7x's 2nd TensorCore);
            # time axis is a true sequential recurrence ("arbitrary").
            dimension_semantics=("parallel", "arbitrary"),
            vmem_limit_bytes=limit,
        ),
        cost_estimate=cost,
    )(gates_x, whh_t)


# ---------------------------------------------------------------------------
# One-time weight prepacking (transpose + cast + 128-aligned gate layout).
# ---------------------------------------------------------------------------
def prepack_params(params, *, compute_dtype=jnp.bfloat16):
    emb_w = params["emb_w"]          # (V, E), row pad_id is zero
    w_ih = params["w_ih"]            # (4H, E)
    w_hh = params["w_hh"]            # (4H, H)
    b_ih, b_hh = params["b_ih"], params["b_hh"]
    b_out = params["b_out"]          # (V,)

    V, E = emb_w.shape
    H = w_hh.shape[1]
    assert w_ih.shape == (4 * H, E)
    assert E == H, "weight tying requires hidden_size == emb_size"

    Ep = _round_up(E, 128)
    Hp = _round_up(H, 128)
    Vp = _round_up(V, 128)

    def pack_gate_cols(w_t, rows_p):
        # w_t: (rows, 4H) -> (rows_p, 4*Hp) with each gate in a 128-aligned slot.
        rows = w_t.shape[0]
        out = jnp.zeros((rows_p, 4 * Hp), w_t.dtype)
        for g in range(4):
            out = out.at[:rows, g * Hp:g * Hp + H].set(w_t[:, g * H:(g + 1) * H])
        return out

    w_ih_t = pack_gate_cols(jnp.transpose(w_ih), Ep).astype(compute_dtype)   # (Ep, 4Hp)
    w_hh_t = pack_gate_cols(jnp.transpose(w_hh), Hp).astype(compute_dtype)   # (Hp, 4Hp)

    b_sum = (b_ih + b_hh).astype(jnp.float32)
    b_gates = jnp.zeros((1, 4 * Hp), jnp.float32)
    for g in range(4):
        b_gates = b_gates.at[0, g * Hp:g * Hp + H].set(b_sum[g * H:(g + 1) * H])

    emb_table = jnp.pad(emb_w, ((0, 0), (0, Ep - E))).astype(compute_dtype)   # (V, Ep) gather
    emb_w_t = jnp.pad(jnp.transpose(emb_w),
                      ((0, Hp - H), (0, Vp - V))).astype(compute_dtype)       # (Hp, Vp) tied
    b_out_p = jnp.pad(b_out.astype(jnp.float32), (0, Vp - V)).reshape(1, Vp)

    return dict(emb_table=emb_table, w_ih_t=w_ih_t, w_hh_t=w_hh_t,
                b_gates=b_gates, emb_w_t=emb_w_t, b_out=b_out_p,
                dims=dict(V=V, E=E, H=H, Ep=Ep, Hp=Hp, Vp=Vp),
                compute_dtype=jnp.dtype(compute_dtype))


# ---------------------------------------------------------------------------
# Full forward pass (eval mode: emb_dropout / out_dropout are identity).
# ---------------------------------------------------------------------------
def lm_lstm_weight_tying_forward(tokens, packed, *, ct=32, batch_chunks=1):
    """tokens: (T, B) int32 (batch_first=False). Returns (T, V, B) float32."""
    dims = packed["dims"]
    V, Ep, Hp, Vp = dims["V"], dims["Ep"], dims["Hp"], dims["Vp"]
    cdt = packed["compute_dtype"]

    T, B = tokens.shape
    ct = max(1, min(ct, T))
    T_pad = _round_up(T, ct)
    B_pad = _round_up(B, 8 * batch_chunks)
    vmem_limit = _vmem_limit_bytes()

    tok = jnp.pad(tokens, ((0, T_pad - T), (0, B_pad - B)))        # pad with token 0

    # Embedding gather directly in the compute dtype (halves the intermediate vs f32).
    # TODO(synk): fuse this gather into the input-projection kernel via scalar prefetch
    # (pl.Element row gather) to avoid materializing emb in HBM at all.
    emb = jnp.take(packed["emb_table"], tok, axis=0)               # (T_pad, B_pad, Ep)

    # 1) Batched input projection (no recurrent dependency). gates_x emitted in the
    #    compute dtype (bf16) with f32 accumulation inside the kernel.
    gates_x = _matmul_bias(emb.reshape(T_pad * B_pad, Ep), packed["w_ih_t"],
                           packed["b_gates"], out_dtype=cdt, vmem_limit=vmem_limit)
    gates_x = gates_x.reshape(T_pad, B_pad, 4 * Hp)

    # 2) Serial LSTM recurrence (only the (B,Hp)@(Hp,4Hp) recurrent dot per step).
    h_all = _lstm_recurrence(gates_x, packed["w_hh_t"], hp=Hp, ct=ct,
                             batch_chunks=batch_chunks, vmem_limit=vmem_limit)

    # 3) Tied output projection (h_all already in compute dtype, weight prepacked).
    logits = _matmul_bias(h_all.reshape(T_pad * B_pad, Hp), packed["emb_w_t"],
                          packed["b_out"], out_dtype=jnp.float32,
                          vmem_limit=vmem_limit)
    logits = logits.reshape(T_pad, B_pad, Vp)[:T, :B, :V]

    # .permute(0, 2, 1). Kept as an XLA transpose: with small B a (V, B)-tiled kernel
    # output would hit masked partial stores (lane dim < 128); skip it entirely if the
    # consumer accepts (T, B, V).
    return jnp.transpose(logits, (0, 2, 1))                        # (T, V, B)


# ---------------------------------------------------------------------------
# Pure-JAX reference (same math) for correctness checking.
# ---------------------------------------------------------------------------
def _reference_forward(tokens, params):
    emb_w = params["emb_w"]
    w_ih, w_hh = params["w_ih"], params["w_hh"]
    b_ih, b_hh = params["b_ih"], params["b_hh"]
    b_out = params["b_out"]
    H = w_hh.shape[1]
    emb = jnp.take(emb_w, tokens, axis=0)                          # (T, B, E)
    B = tokens.shape[1]

    def step(carry, x_t):
        h, c = carry
        gates = x_t @ w_ih.T + b_ih + h @ w_hh.T + b_hh
        i = jax.nn.sigmoid(gates[:, 0 * H:1 * H])
        f = jax.nn.sigmoid(gates[:, 1 * H:2 * H])
        g = jnp.tanh(gates[:, 2 * H:3 * H])
        o = jax.nn.sigmoid(gates[:, 3 * H:4 * H])
        c = f * c + i * g
        h = o * jnp.tanh(c)
        return (h, c), h

    h0 = jnp.zeros((B, H), jnp.float32)
    _, hs = lax.scan(step, (h0, h0), emb)                          # (T, B, H)
    logits = hs @ emb_w.T + b_out                                  # tied
    return jnp.transpose(logits, (0, 2, 1))


if __name__ == "__main__":
    # Small shapes consistent with the module.
    T, B = 8, 8
    vocab_size = 64          # output_size
    emb_size = 32
    hidden_size = 32         # must equal emb_size for weight tying
    pad_id = 0

    key = jax.random.PRNGKey(0)
    k_emb, k_wih, k_whh, k_bih, k_bhh, k_bo, k_tok = jax.random.split(key, 7)

    emb_w = 0.1 * jax.random.normal(k_emb, (vocab_size, emb_size), jnp.float32)
    emb_w = emb_w.at[pad_id].set(0.0)                 # padding_idx row is zero
    params = {
        "emb_w": emb_w,
        "w_ih": 0.1 * jax.random.normal(k_wih, (4 * hidden_size, emb_size), jnp.float32),
        "w_hh": 0.1 * jax.random.normal(k_whh, (4 * hidden_size, hidden_size), jnp.float32),
        "b_ih": 0.1 * jax.random.normal(k_bih, (4 * hidden_size,), jnp.float32),
        "b_hh": 0.1 * jax.random.normal(k_bhh, (4 * hidden_size,), jnp.float32),
        "b_out": 0.1 * jax.random.normal(k_bo, (vocab_size,), jnp.float32),
    }

    tokens = jax.random.randint(k_tok, (T, B), 0, vocab_size, dtype=jnp.int32)

    ref = jax.block_until_ready(_reference_forward(tokens, params))

    # f32 compute path: structural check against the f32 reference.
    packed_f32 = prepack_params(params, compute_dtype=jnp.float32)
    out_f32 = jax.block_until_ready(
        lm_lstm_weight_tying_forward(tokens, packed_f32))
    assert out_f32.shape == (T, vocab_size, B)
    assert jnp.allclose(out_f32, ref, atol=1e-3, rtol=1e-3), "f32 mismatch vs reference"

    # Default fast path: bf16 weights/activations, f32 accumulation / carry.
    packed_bf16 = prepack_params(params, compute_dtype=jnp.bfloat16)
    out_bf16 = jax.block_until_ready(
        lm_lstm_weight_tying_forward(tokens, packed_bf16))
    assert out_bf16.shape == (T, vocab_size, B)
    assert jnp.allclose(out_bf16, ref, atol=3e-2, rtol=3e-2), "bf16 mismatch vs reference"

    # Batch-chunked recurrence (leading "parallel" grid axis; uses v7x's 2nd TensorCore).
    out_bc2 = jax.block_until_ready(
        lm_lstm_weight_tying_forward(tokens, packed_bf16, batch_chunks=2))
    assert out_bc2.shape == (T, vocab_size, B)
    assert jnp.allclose(out_bc2, ref, atol=3e-2, rtol=3e-2), "batch-chunked mismatch"

    # TODO(synk): training-mode dropout masks are not implemented (identity in eval mode).
    print("KERNEL_OK")
</pallas_src>

<mosaic_0001>
module attributes {stable_mosaic.version = 11 : i64} {
  func.func @_mm_bias_single_k_kernel(%arg0: i32, %arg1: i32, %arg2: i32, %arg3: memref<64x128xf32, #tpu.memory_space<vmem>>, %arg4: memref<128x512xf32, #tpu.memory_space<vmem>>, %arg5: memref<1x512xf32, #tpu.memory_space<vmem>>, %arg6: memref<64x512xf32, #tpu.memory_space<vmem>>) attributes {dimension_semantics = [#tpu.dimension_semantics<parallel>, #tpu.dimension_semantics<parallel>, #tpu.dimension_semantics<arbitrary>], iteration_bounds = array<i64: 1, 1, 1>, scalar_prefetch = 0 : i64, scratch_operands = 0 : i64, tpu.core_type = #tpu.core_type<tc>, window_params = [{transform_indices = @transform_0, window_bounds = array<i64: 64, 128>}, {transform_indices = @transform_1, window_bounds = array<i64: 128, 512>}, {transform_indices = @transform_2, window_bounds = array<i64: 1, 512>}, {transform_indices = @transform_3, window_bounds = array<i64: 64, 512>}]} {
    %c0 = arith.constant 0 : index
    %c0_0 = arith.constant 0 : index
    %0 = vector.load %arg3[%c0, %c0_0] : memref<64x128xf32, #tpu.memory_space<vmem>>, vector<64x128xf32>
    %c0_1 = arith.constant 0 : index
    %c0_2 = arith.constant 0 : index
    %1 = vector.load %arg4[%c0_1, %c0_2] : memref<128x512xf32, #tpu.memory_space<vmem>>, vector<128x512xf32>
    %cst = arith.constant dense<0.000000e+00> : vector<64x512xf32>
    %2 = tpu.matmul %0, %1, %cst {dimension_numbers = #tpu.dot_dimension_numbers<[1], [0], [0], [1], [0, 0, 1, 1], [], []>} : vector<64x128xf32>, vector<128x512xf32>, vector<64x512xf32> -> vector<64x512xf32>
    %c0_3 = arith.constant 0 : index
    %c0_4 = arith.constant 0 : index
    %3 = vector.load %arg5[%c0_3, %c0_4] : memref<1x512xf32, #tpu.memory_space<vmem>>, vector<1x512xf32>
    %4 = vector.broadcast %3 : vector<1x512xf32> to vector<64x512xf32>
    %5 = arith.addf %2, %4 : vector<64x512xf32>
    %c0_5 = arith.constant 0 : index
    %c0_6 = arith.constant 0 : index
    %6 = vector.load %arg6[%c0_5, %c0_6] : memref<64x512xf32, #tpu.memory_space<vmem>>, vector<64x512xf32>
    tpu.vector_store %arg6[%c0_5, %c0_6], %5 {strides = array<i32>} : memref<64x512xf32, #tpu.memory_space<vmem>>, vector<64x512xf32>,
    return
  }
  func.func @transform_0(%arg0: i32, %arg1: i32, %arg2: i32) -> (i32, i32) {
    %c0_i32 = arith.constant 0 : i32
    return %arg0, %arg2 : i32, i32
  }
  func.func @transform_1(%arg0: i32, %arg1: i32, %arg2: i32) -> (i32, i32) {
    %c0_i32 = arith.constant 0 : i32
    return %arg2, %arg1 : i32, i32
  }
  func.func @transform_2(%arg0: i32, %arg1: i32, %arg2: i32) -> (i32, i32) {
    %c0_i32 = arith.constant 0 : i32
    %c0_i32_0 = arith.constant 0 : i32
    return %c0_i32, %arg1 : i32, i32
  }
  func.func @transform_3(%arg0: i32, %arg1: i32, %arg2: i32) -> (i32, i32) {
    %c0_i32 = arith.constant 0 : i32
    return %arg0, %arg1 : i32, i32
  }
}

</mosaic_0001>

<llo_original>
// kernel: tpu_custom_call.1
$region0: #{tpu_custom_call.1}
  #allocation0 [shape = 'u32[]', space=smem, size = 0x4, offset = 0x4, fixed_abs, tag = 'smem constant byte address 0x4 - core index']
  #allocation1 [shape = 'u32[144,128]{1,0:T(1,128)}', space=vmem, size = 0x12000, scoped, tag = 'internal scratch']
  %s0 = inlined_call_operand.hbm [shape: f32[64,128], index: 0, kind: input, shape index: {}]
  %s1 = inlined_call_operand.hbm [shape: f32[128,512], index: 1, kind: input, shape index: {}]
  %s2 = inlined_call_operand.vmem [shape: f32[1,512], index: 2, kind: input, shape index: {}]
  %s3 = inlined_call_operand.hbm [shape: f32[64,512], index: 3, kind: output, shape index: {}]
  %s4 = sld [smem:[#allocation0]]
  $region30: #{tpu_custom_call.1} parent=0
    _
  %s6 = ssub.s32 1, %s4
  %s7 = scalar_select 0, %s6, %s4
  $region1: #{tpu_custom_call.1} parent=0
    #allocation2 [shape = 'u8[32768]{0}', space=vmem, size = 0x8000, scoped, tag = 'input window, operand 0, single buffered']
    #allocation3 [shape = 's32[1]{0}', space=sflag, size = 0x4, scoped, tag = 'scoped memory for tpu_custom_call.1']
    #allocation4 [shape = 's32[1]{0}', space=sflag, size = 0x4, scoped, tag = 'scoped memory for tpu_custom_call.1']
    #allocation5 [shape = 'u8[262144]{0}', space=vmem, size = 0x40000, scoped, tag = 'input window, operand 1, single buffered']
    #allocation6 [shape = 's32[1]{0}', space=sflag, size = 0x4, scoped, tag = 'scoped memory for tpu_custom_call.1']
    #allocation7 [shape = 'u8[131072]{0}', space=vmem, size = 0x20000, scoped, tag = 'output window, operand 0, single buffered']
    %8 = vsyncpa [#allocation3], 0
    %9 = vsyncpa [#allocation6], 0
    %10 = vsyncpa [#allocation4], 0
    // Predicated region
    $region2: #{tpu_custom_call.1} parent=1 // pred_check
      _
    $region3: #{tpu_custom_call.1} parent=1 // pred_check_branch
      %12 = sbr.rel (0) target = $region5
    $region4: #{tpu_custom_call.1} parent=1 // pred_region
      %s14 = ssub.s32 1024, 1024
      %15 = vsyncadd [#allocation3], %s14
      %s16 = sshll.u32 [#allocation2], 4
      %s17 = int_to_ptr.vmem [resolvable:$true] %s16
      %22 = dma.hbm_to_vmem [thread:$0]  %s0, 1024, %s17, [#allocation3], 128, 128, 8
    $region5: #{tpu_custom_call.1} parent=1 // pred_fallthru
      _
    // Predicated region
    $region6: #{tpu_custom_call.1} parent=1 // pred_check
      _
    $region7: #{tpu_custom_call.1} parent=1 // pred_check_branch
      %24 = sbr.rel (0) target = $region9
    $region8: #{tpu_custom_call.1} parent=1 // pred_region
      %s26 = ssub.s32 8192, 8192
      %27 = vsyncadd [#allocation6], %s26
      %s28 = sshll.u32 [#allocation5], 4
      %s29 = int_to_ptr.vmem [resolvable:$true] %s28
      %34 = dma.hbm_to_vmem [thread:$0]  %s1, 8192, %s29, [#allocation6], 512, 512, 32
    $region9: #{tpu_custom_call.1} parent=1 // pred_fallthru
      _
    // Predicated region
    $region10: #{tpu_custom_call.1} parent=1 // pred_check
      _
    $region11: #{tpu_custom_call.1} parent=1 // pred_check_branch
      %36 = sbr.rel (0) target = $region13
    $region12: #{tpu_custom_call.1} parent=1 // pred_region
      _
    $region13: #{tpu_custom_call.1} parent=1 // pred_fallthru
      _
    // Predicated region
    $region14: #{tpu_custom_call.1} parent=1 // pred_check
      _
    $region15: #{tpu_custom_call.1} parent=1 // pred_check_branch
      %38 = sbr.rel (0) target = $region17
    $region16: #{tpu_custom_call.1} parent=1 // pred_region
      %39 = dma.done [#allocation3], 1024
    $region17: #{tpu_custom_call.1} parent=1 // pred_fallthru
      _
    // Predicated region
    $region18: #{tpu_custom_call.1} parent=1 // pred_check
      _
    $region19: #{tpu_custom_call.1} parent=1 // pred_check_branch
      %41 = sbr.rel (0) target = $region21
    $region20: #{tpu_custom_call.1} parent=1 // pred_region
      %42 = dma.done [#allocation6], 8192
    $region21: #{tpu_custom_call.1} parent=1 // pred_fallthru
      _
    %v43 = vld [vmem:[#allocation2] sm:$0xff]
    %v44 = vld [vmem:[#allocation2 + $0x8] sm:$0xff]
    %v45 = vld [vmem:[#allocation2 + $0x10] sm:$0xff]
    %v46 = vld [vmem:[#allocation2 + $0x18] sm:$0xff]
    %v47 = vld [vmem:[#allocation2 + $0x20] sm:$0xff]
    %v48 = vld [vmem:[#allocation2 + $0x28] sm:$0xff]
    %v49 = vld [vmem:[#allocation2 + $0x30] sm:$0xff]
    %v50 = vld [vmem:[#allocation2 + $0x38] sm:$0xff]
    %v51 = vld [vmem:[#allocation5] sm:$0xff]
    %v52 = vld [vmem:[#allocation5 + $0x8] sm:$0xff]
    %v53 = vld [vmem:[#allocation5 + $0x10] sm:$0xff]
    %v54 = vld [vmem:[#allocation5 + $0x18] sm:$0xff]
    %v55 = vld [vmem:[#allocation5 + $0x20] sm:$0xff]
    %v56 = vld [vmem:[#allocation5 + $0x28] sm:$0xff]
    %v57 = vld [vmem:[#allocation5 + $0x30] sm:$0xff]
    %v58 = vld [vmem:[#allocation5 + $0x38] sm:$0xff]
    %v59 = vld [vmem:[#allocation5 + $0x40] sm:$0xff]
    %v60 = vld [vmem:[#allocation5 + $0x48] sm:$0xff]
    %v61 = vld [vmem:[#allocation5 + $0x50] sm:$0xff]
    %v62 = vld [vmem:[#allocation5 + $0x58] sm:$0xff]
    %v63 = vld [vmem:[#allocation5 + $0x60] sm:$0xff]
    %v64 = vld [vmem:[#allocation5 + $0x68] sm:$0xff]
    %v65 = vld [vmem:[#allocation5 + $0x70] sm:$0xff]
    %v66 = vld [vmem:[#allocation5 + $0x78] sm:$0xff]
    %v67 = vld [vmem:[#allocation5 + $0x80] sm:$0xff]
    %v68 = vld [vmem:[#allocation5 + $0x88] sm:$0xff]
    %v69 = vld [vmem:[#allocation5 + $0x90] sm:$0xff]
    %v70 = vld [vmem:[#allocation5 + $0x98] sm:$0xff]
    %v71 = vld [vmem:[#allocation5 + $0xa0] sm:$0xff]
    %v72 = vld [vmem:[#allocation5 + $0xa8] sm:$0xff]
    %v73 = vld [vmem:[#allocation5 + $0xb0] sm:$0xff]
    %v74 = vld [vmem:[#allocation5 + $0xb8] sm:$0xff]
    %v75 = vld [vmem:[#allocation5 + $0xc0] sm:$0xff]
    %v76 = vld [vmem:[#allocation5 + $0xc8] sm:$0xff]
    %v77 = vld [vmem:[#allocation5 + $0xd0] sm:$0xff]
    %v78 = vld [vmem:[#allocation5 + $0xd8] sm:$0xff]
    %v79 = vld [vmem:[#allocation5 + $0xe0] sm:$0xff]
    %v80 = vld [vmem:[#allocation5 + $0xe8] sm:$0xff]
    %v81 = vld [vmem:[#allocation5 + $0xf0] sm:$0xff]
    %v82 = vld [vmem:[#allocation5 + $0xf8] sm:$0xff]
    %v83 = vld [vmem:[#allocation5 + $0x100] sm:$0xff]
    %v84 = vld [vmem:[#allocation5 + $0x108] sm:$0xff]
    %v85 = vld [vmem:[#allocation5 + $0x110] sm:$0xff]
    %v86 = vld [vmem:[#allocation5 + $0x118] sm:$0xff]
    %v87 = vld [vmem:[#allocation5 + $0x120] sm:$0xff]
    %v88 = vld [vmem:[#allocation5 + $0x128] sm:$0xff]
    %v89 = vld [vmem:[#allocation5 + $0x130] sm:$0xff]
    %v90 = vld [vmem:[#allocation5 + $0x138] sm:$0xff]
    %v91 = vld [vmem:[#allocation5 + $0x140] sm:$0xff]
    %v92 = vld [vmem:[#allocation5 + $0x148] sm:$0xff]
    %v93 = vld [vmem:[#allocation5 + $0x150] sm:$0xff]
    %v94 = vld [vmem:[#allocation5 + $0x158] sm:$0xff]
    %v95 = vld [vmem:[#allocation5 + $0x160] sm:$0xff]
    %v96 = vld [vmem:[#allocation5 + $0x168] sm:$0xff]
    %v97 = vld [vmem:[#allocation5 + $0x170] sm:$0xff]
    %v98 = vld [vmem:[#allocation5 + $0x178] sm:$0xff]
    %v99 = vld [vmem:[#allocation5 + $0x180] sm:$0xff]
    %v100 = vld [vmem:[#allocation5 + $0x188] sm:$0xff]
    %v101 = vld [vmem:[#allocation5 + $0x190] sm:$0xff]
    %v102 = vld [vmem:[#allocation5 + $0x198] sm:$0xff]
    %v103 = vld [vmem:[#allocation5 + $0x1a0] sm:$0xff]
    %v104 = vld [vmem:[#allocation5 + $0x1a8] sm:$0xff]
    %v105 = vld [vmem:[#allocation5 + $0x1b0] sm:$0xff]
    %v106 = vld [vmem:[#allocation5 + $0x1b8] sm:$0xff]
    %v107 = vld [vmem:[#allocation5 + $0x1c0] sm:$0xff]
    %v108 = vld [vmem:[#allocation5 + $0x1c8] sm:$0xff]
    %v109 = vld [vmem:[#allocation5 + $0x1d0] sm:$0xff]
    %v110 = vld [vmem:[#allocation5 + $0x1d8] sm:$0xff]
    %v111 = vld [vmem:[#allocation5 + $0x1e0] sm:$0xff]
    %v112 = vld [vmem:[#allocation5 + $0x1e8] sm:$0xff]
    %v113 = vld [vmem:[#allocation5 + $0x1f0] sm:$0xff]
    %v114 = vld [vmem:[#allocation5 + $0x1f8] sm:$0xff]
    %v115 = vld [vmem:[%s2] sm:$0xf]
    %v117 = vlaneseq
    %v118 = vshrl.u32 %v117, 7
    %v119 = vsub.s32 0, %v118
    %v120 = vrot.slane %v115, %v119
    %v121 = vlaneseq
    %v122 = vshrl.u32 %v121, 7
    %v123 = vsub.s32 1, %v122
    %v124 = vrot.slane %v115, %v123
    %v125 = vlaneseq
    %v126 = vshrl.u32 %v125, 7
    %v127 = vsub.s32 2, %v126
    %v128 = vrot.slane %v115, %v127
    %v129 = vlaneseq
    %v130 = vshrl.u32 %v129, 7
    %v131 = vsub.s32 3, %v130
    %v132 = vrot.slane %v115, %v131
    %137 = vmatprep.subr.mxu0 %v52
    %138 = vmatpush1.msra.mxu0 %v51
    %139 = vmatprep.subr.mxu0 %v56
    %140 = vmatpush1.msra.mxu0 %v55
    %141 = vmatprep.subr.mxu0 %v60
    %142 = vmatpush1.msra.mxu0 %v59
    %143 = vmatprep.subr.mxu0 %v64
    %144 = vmatpush1.msra.mxu0 %v63
    %145 = vmatprep.subr.mxu0 %v68
    %146 = vmatpush1.msra.mxu0 %v67
    %147 = vmatprep.subr.mxu0 %v72
    %148 = vmatpush1.msra.mxu0 %v71
    %149 = vmatprep.subr.mxu0 %v76
    %150 = vmatpush1.msra.mxu0 %v75
    %151 = vmatprep.subr.mxu0 %v80
    %152 = vmatpush1.msra.mxu0 %v79
    %153 = vmatprep.subr.mxu0 %v84
    %154 = vmatpush1.msra.mxu0 %v83
    %155 = vmatprep.subr.mxu0 %v88
    %156 = vmatpush1.msra.mxu0 %v87
    %157 = vmatprep.subr.mxu0 %v92
    %158 = vmatpush1.msra.mxu0 %v91
    %159 = vmatprep.subr.mxu0 %v96
    %160 = vmatpush1.msra.mxu0 %v95
    %161 = vmatprep.subr.mxu0 %v100
    %162 = vmatpush1.msra.mxu0 %v99
    %163 = vmatprep.subr.mxu0 %v104
    %164 = vmatpush1.msra.mxu0 %v103
    %165 = vmatprep.subr.mxu0 %v108
    %166 = vmatpush1.msra.mxu0 %v107
    %167 = vmatprep.subr.mxu0 %v112
    %168 = vmatpush1.msra.mxu0 %v111
    %169 = vmatprep.subr.mxu0 0.0
    %170 = vmatpush1.msra.mxu0 0.0
    %171 = vmatprep.subr.mxu0 0.0
    %172 = vmatpush1.msra.mxu0 0.0
    %173 = vmatprep.subr.mxu0 0.0
    %174 = vmatpush1.msra.mxu0 0.0
    %175 = vmatprep.subr.mxu0 0.0
    %176 = vmatpush1.msra.mxu0 0.0
    %177 = vmatprep.subr.mxu0 0.0
    %178 = vmatpush1.msra.mxu0 0.0
    %179 = vmatprep.subr.mxu0 0.0
    %180 = vmatpush1.msra.mxu0 0.0
    %181 = vmatprep.subr.mxu0 0.0
    %182 = vmatpush1.msra.mxu0 0.0
    %183 = vmatprep.subr.mxu0 0.0
    %184 = vmatpush1.msra.mxu0 0.0
    %185 = vmatprep.subr.mxu0 0.0
    %186 = vmatpush1.msra.mxu0 0.0
    %187 = vmatprep.subr.mxu0 0.0
    %188 = vmatpush1.msra.mxu0 0.0
    %189 = vmatprep.subr.mxu0 0.0
    %190 = vmatpush1.msra.mxu0 0.0
    %191 = vmatprep.subr.mxu0 0.0
    %192 = vmatpush1.msra.mxu0 0.0
    %193 = vmatprep.subr.mxu0 0.0
    %194 = vmatpush1.msra.mxu0 0.0
    %195 = vmatprep.subr.mxu0 0.0
    %196 = vmatpush1.msra.mxu0 0.0
    %197 = vmatprep.subr.mxu0 0.0
    %198 = vmatpush1.msra.mxu0 0.0
    %199 = vmatprep.subr.mxu0 0.0
    %200 = vmatpush1.msra.mxu0 0.0
    %201 = vmatprep.mubr.f32.mxu0 0.0
    %202 = vmatmul.mubr.f32.gmra.mrb[0].mxu0 %v43
    %v203 = vpop.f32.mrb[0].mxu0
    %v204 = vadd.f32 %v120, %v203
    %v205 = vpop.f32.mrb[0].mxu0
    %v206 = vadd.f32 %v124, %v205
    %207 = vmatprep.mubr.f32.mxu0 0.0
    %208 = vmatmul.mubr.f32.gmra.mrb[0].mxu0 %v44
    %v209 = vpop.f32.mrb[0].mxu0
    %v210 = vadd.f32 %v120, %v209
    %v211 = vpop.f32.mrb[0].mxu0
    %v212 = vadd.f32 %v124, %v211
    %213 = vmatprep.mubr.f32.mxu0 0.0
    %214 = vmatmul.mubr.f32.gmra.mrb[0].mxu0 %v45
    %v215 = vpop.f32.mrb[0].mxu0
    %v216 = vadd.f32 %v120, %v215
    %v217 = vpop.f32.mrb[0].mxu0
    %v218 = vadd.f32 %v124, %v217
    %219 = vmatprep.mubr.f32.mxu0 0.0
    %220 = vmatmul.mubr.f32.gmra.mrb[0].mxu0 %v46
    %v221 = vpop.f32.mrb[0].mxu0
    %v222 = vadd.f32 %v120, %v221
    %v223 = vpop.f32.mrb[0].mxu0
    %v224 = vadd.f32 %v124, %v223
    %225 = vmatprep.mubr.f32.mxu0 0.0
    %226 = vmatmul.mubr.f32.gmra.mrb[0].mxu0 %v47
    %v227 = vpop.f32.mrb[0].mxu0
    %v228 = vadd.f32 %v120, %v227
    %v229 = vpop.f32.mrb[0].mxu0
    %v230 = vadd.f32 %v124, %v229
    %231 = vmatprep.mubr.f32.mxu0 0.0
    %232 = vmatmul.mubr.f32.gmra.mrb[0].mxu0 %v48
    %v233 = vpop.f32.mrb[0].mxu0
    %v234 = vadd.f32 %v120, %v233
    %v235 = vpop.f32.mrb[0].mxu0
    %v236 = vadd.f32 %v124, %v235
    %237 = vmatprep.mubr.f32.mxu0 0.0
    %238 = vmatmul.mubr.f32.gmra.mrb[0].mxu0 %v49
    %v239 = vpop.f32.mrb[0].mxu0
    %v240 = vadd.f32 %v120, %v239
    %v241 = vpop.f32.mrb[0].mxu0
    %v242 = vadd.f32 %v124, %v241
    %243 = vmatprep.mubr.f32.mxu0 0.0
    %244 = vmatmul.mubr.f32.gmra.mrb[0].mxu0 %v50
    %v245 = vpop.f32.mrb[0].mxu0
    %v246 = vadd.f32 %v120, %v245
    %v247 = vpop.f32.mrb[0].mxu0
    %v248 = vadd.f32 %v124, %v247
    %249 = vdwg.mxu0
    %250 = vmatprep.subr.mxu0 %v54
    %251 = vmatpush1.msra.mxu0 %v53
    %252 = vmatprep.subr.mxu0 %v58
    %253 = vmatpush1.msra.mxu0 %v57
    %254 = vmatprep.subr.mxu0 %v62
    %255 = vmatpush1.msra.mxu0 %v61
    %256 = vmatprep.subr.mxu0 %v66
    %257 = vmatpush1.msra.mxu0 %v65
    %258 = vmatprep.subr.mxu0 %v70
    %259 = vmatpush1.msra.mxu0 %v69
    %260 = vmatprep.subr.mxu0 %v74
    %261 = vmatpush1.msra.mxu0 %v73
    %262 = vmatprep.subr.mxu0 %v78
    %263 = vmatpush1.msra.mxu0 %v77
    %264 = vmatprep.subr.mxu0 %v82
    %265 = vmatpush1.msra.mxu0 %v81
    %266 = vmatprep.subr.mxu0 %v86
    %267 = vmatpush1.msra.mxu0 %v85
    %268 = vmatprep.subr.mxu0 %v90
    %269 = vmatpush1.msra.mxu0 %v89
    %270 = vmatprep.subr.mxu0 %v94
    %271 = vmatpush1.msra.mxu0 %v93
    %272 = vmatprep.subr.mxu0 %v98
    %273 = vmatpush1.msra.mxu0 %v97
    %274 = vmatprep.subr.mxu0 %v102
    %275 = vmatpush1.msra.mxu0 %v101
    %276 = vmatprep.subr.mxu0 %v106
    %277 = vmatpush1.msra.mxu0 %v105
    %278 = vmatprep.subr.mxu0 %v110
    %279 = vmatpush1.msra.mxu0 %v109
    %280 = vmatprep.subr.mxu0 %v114
    %281 = vmatpush1.msra.mxu0 %v113
    %282 = vmatprep.subr.mxu0 0.0
    %283 = vmatpush1.msra.mxu0 0.0
    %284 = vmatprep.subr.mxu0 0.0
    %285 = vmatpush1.msra.mxu0 0.0
    %286 = vmatprep.subr.mxu0 0.0
    %287 = vmatpush1.msra.mxu0 0.0
    %288 = vmatprep.subr.mxu0 0.0
    %289 = vmatpush1.msra.mxu0 0.0
    %290 = vmatprep.subr.mxu0 0.0
    %291 = vmatpush1.msra.mxu0 0.0
    %292 = vmatprep.subr.mxu0 0.0
    %293 = vmatpush1.msra.mxu0 0.0
    %294 = vmatprep.subr.mxu0 0.0
    %295 = vmatpush1.msra.mxu0 0.0
    %296 = vmatprep.subr.mxu0 0.0
    %297 = vmatpush1.msra.mxu0 0.0
    %298 = vmatprep.subr.mxu0 0.0
    %299 = vmatpush1.msra.mxu0 0.0
    %300 = vmatprep.subr.mxu0 0.0
    %301 = vmatpush1.msra.mxu0 0.0
    %302 = vmatprep.subr.mxu0 0.0
    %303 = vmatpush1.msra.mxu0 0.0
    %304 = vmatprep.subr.mxu0 0.0
    %305 = vmatpush1.msra.mxu0 0.0
    %306 = vmatprep.subr.mxu0 0.0
    %307 = vmatpush1.msra.mxu0 0.0
    %308 = vmatprep.subr.mxu0 0.0
    %309 = vmatpush1.msra.mxu0 0.0
    %310 = vmatprep.subr.mxu0 0.0
    %311 = vmatpush1.msra.mxu0 0.0
    %312 = vmatprep.subr.mxu0 0.0
    %313 = vmatpush1.msra.mxu0 0.0
    %314 = vmatprep.mubr.f32.mxu0 0.0
    %315 = vmatmul.mubr.f32.gmra.mrb[0].mxu0 %v43
    %v316 = vpop.f32.mrb[0].mxu0
    %v317 = vadd.f32 %v128, %v316
    %v318 = vpop.f32.mrb[0].mxu0
    %v319 = vadd.f32 %v132, %v318
    %320 = vmatprep.mubr.f32.mxu0 0.0
    %321 = vmatmul.mubr.f32.gmra.mrb[0].mxu0 %v44
    %v322 = vpop.f32.mrb[0].mxu0
    %v323 = vadd.f32 %v128, %v322
    %v324 = vpop.f32.mrb[0].mxu0
    %v325 = vadd.f32 %v132, %v324
    %326 = vmatprep.mubr.f32.mxu0 0.0
    %327 = vmatmul.mubr.f32.gmra.mrb[0].mxu0 %v45
    %v328 = vpop.f32.mrb[0].mxu0
    %v329 = vadd.f32 %v128, %v328
    %v330 = vpop.f32.mrb[0].mxu0
    %v331 = vadd.f32 %v132, %v330
    %332 = vmatprep.mubr.f32.mxu0 0.0
    %333 = vmatmul.mubr.f32.gmra.mrb[0].mxu0 %v46
    %v334 = vpop.f32.mrb[0].mxu0
    %v335 = vadd.f32 %v128, %v334
    %v336 = vpop.f32.mrb[0].mxu0
    %v337 = vadd.f32 %v132, %v336
    %338 = vmatprep.mubr.f32.mxu0 0.0
    %339 = vmatmul.mubr.f32.gmra.mrb[0].mxu0 %v47
    %v340 = vpop.f32.mrb[0].mxu0
    %v341 = vadd.f32 %v128, %v340
    %v342 = vpop.f32.mrb[0].mxu0
    %v343 = vadd.f32 %v132, %v342
    %344 = vmatprep.mubr.f32.mxu0 0.0
    %345 = vmatmul.mubr.f32.gmra.mrb[0].mxu0 %v48
    %v346 = vpop.f32.mrb[0].mxu0
    %v347 = vadd.f32 %v128, %v346
    %v348 = vpop.f32.mrb[0].mxu0
    %v349 = vadd.f32 %v132, %v348
    %350 = vmatprep.mubr.f32.mxu0 0.0
    %351 = vmatmul.mubr.f32.gmra.mrb[0].mxu0 %v49
    %v352 = vpop.f32.mrb[0].mxu0
    %v353 = vadd.f32 %v128, %v352
    %v354 = vpop.f32.mrb[0].mxu0
    %v355 = vadd.f32 %v132, %v354
    %356 = vmatprep.mubr.f32.mxu0 0.0
    %357 = vmatmul.mubr.f32.gmra.mrb[0].mxu0 %v50
    %v358 = vpop.f32.mrb[0].mxu0
    %v359 = vadd.f32 %v128, %v358
    %v360 = vpop.f32.mrb[0].mxu0
    %v361 = vadd.f32 %v132, %v360
    %362 = vdwg.mxu0
    %363 = vst [vmem:[#allocation7] sm:$0xff] %v204
    %364 = vst [vmem:[#allocation7 + $0x8] sm:$0xff] %v206
    %365 = vst [vmem:[#allocation7 + $0x10] sm:$0xff] %v317
    %366 = vst [vmem:[#allocation7 + $0x18] sm:$0xff] %v319
    %367 = vst [vmem:[#allocation7 + $0x20] sm:$0xff] %v210
    %368 = vst [vmem:[#allocation7 + $0x28] sm:$0xff] %v212
    %369 = vst [vmem:[#allocation7 + $0x30] sm:$0xff] %v323
    %370 = vst [vmem:[#allocation7 + $0x38] sm:$0xff] %v325
    %371 = vst [vmem:[#allocation7 + $0x40] sm:$0xff] %v216
    %372 = vst [vmem:[#allocation7 + $0x48] sm:$0xff] %v218
    %373 = vst [vmem:[#allocation7 + $0x50] sm:$0xff] %v329
    %374 = vst [vmem:[#allocation7 + $0x58] sm:$0xff] %v331
    %375 = vst [vmem:[#allocation7 + $0x60] sm:$0xff] %v222
    %376 = vst [vmem:[#allocation7 + $0x68] sm:$0xff] %v224
    %377 = vst [vmem:[#allocation7 + $0x70] sm:$0xff] %v335
    %378 = vst [vmem:[#allocation7 + $0x78] sm:$0xff] %v337
    %379 = vst [vmem:[#allocation7 + $0x80] sm:$0xff] %v228
    %380 = vst [vmem:[#allocation7 + $0x88] sm:$0xff] %v230
    %381 = vst [vmem:[#allocation7 + $0x90] sm:$0xff] %v341
    %382 = vst [vmem:[#allocation7 + $0x98] sm:$0xff] %v343
    %383 = vst [vmem:[#allocation7 + $0xa0] sm:$0xff] %v234
    %384 = vst [vmem:[#allocation7 + $0xa8] sm:$0xff] %v236
    %385 = vst [vmem:[#allocation7 + $0xb0] sm:$0xff] %v347
    %386 = vst [vmem:[#allocation7 + $0xb8] sm:$0xff] %v349
    %387 = vst [vmem:[#allocation7 + $0xc0] sm:$0xff] %v240
    %388 = vst [vmem:[#allocation7 + $0xc8] sm:$0xff] %v242
    %389 = vst [vmem:[#allocation7 + $0xd0] sm:$0xff] %v353
    %390 = vst [vmem:[#allocation7 + $0xd8] sm:$0xff] %v355
    %391 = vst [vmem:[#allocation7 + $0xe0] sm:$0xff] %v246
    %392 = vst [vmem:[#allocation7 + $0xe8] sm:$0xff] %v248
    %393 = vst [vmem:[#allocation7 + $0xf0] sm:$0xff] %v359
    %394 = vst [vmem:[#allocation7 + $0xf8] sm:$0xff] %v361
    // Predicated region
    $region22: #{tpu_custom_call.1} parent=1 // pred_check
      _
    $region23: #{tpu_custom_call.1} parent=1 // pred_check_branch
      %396 = sbr.rel (0) target = $region25
    $region24: #{tpu_custom_call.1} parent=1 // pred_region
      %s398 = ssub.s32 4096, 4096
      %399 = vsyncadd [#allocation4], %s398
      %s400 = sshll.u32 [#allocation7], 4
      %s401 = int_to_ptr.vmem [resolvable:$true] %s400
      %406 = dma.vmem_to_hbm [thread:$0]  %s401, 4096, %s3, [#allocation4], 512, 512, 32
    $region25: #{tpu_custom_call.1} parent=1 // pred_fallthru
      _
    // Predicated region
    $region26: #{tpu_custom_call.1} parent=1 // pred_check
      _
    $region27: #{tpu_custom_call.1} parent=1 // pred_check_branch
      %408 = sbr.rel (0) target = $region29
    $region28: #{tpu_custom_call.1} parent=1 // pred_region
      %409 = dma.done [#allocation4], 4096
    $region29: #{tpu_custom_call.1} parent=1 // pred_fallthru
      _
    %410 = vsyncpa [#allocation3], 1
    %411 = vsyncpa [#allocation6], 1
    %412 = vsyncpa [#allocation4], 1

</llo_original>
